<compile_context>
chip_gen: v7x
topology: tpu7x:2x2x1
jax: 0.10.0
libtpu: 0.0.40
codegen_flags: <defaults>
</compile_context>

<pallas_src>
import jax
import jax.numpy as jnp
from jax.experimental import pallas as pl
from jax.experimental.pallas import tpu as pltpu


def _round_up(x, m):
    return (x + m - 1) // m * m


def _pick_tile_p(hwp, cp, op, n_batch, budget_bytes=28 * 1024 * 1024):
    """VMEM-aware pooled-pixel tile size.

    Per-step working set (everything counted double-buffered, including the
    constant-index weight, so the estimate is conservative on every chip):
      input  : 2 * (4 * TP * Cp) * 2 B   (bf16 activations)
      output : 2 * (TP * Op)     * 4 B   (f32)
      weight : 2 * (Cp * Op)     * 2 B   (bf16)
      ss     : 2 * (2 * Cp)      * 4 B   (f32 scale/shift)
    A ~28 MiB budget fits under the v7x scoped default (32 MiB, 64 MiB
    physical) and leaves large headroom on v5e/v6e (128 MiB physical).
    """
    fixed = 2 * cp * op * 2 + 2 * 2 * cp * 4
    per_tp = 2 * (4 * cp * 2) + 2 * (op * 4)
    tp_max = max((budget_bytes - fixed) // per_tp, 16)
    tp_max = max(tp_max // 16 * 16, 16)              # bf16 sublane packing: x16
    tp = min(_round_up(hwp, 16), tp_max, 1024)       # 1024 cap: diminishing DMA gain
    # v7x has 2 TensorCores: keep the parallel grid >= 2 steps when possible.
    if n_batch * pl.cdiv(hwp, tp) < 2 and tp > 16:
        tp = max(_round_up(pl.cdiv(tp, 2), 16), 16)
    return tp


def _transition_kernel(x_ref, ss_ref, w_ref, o_ref):
    # x_ref:  (1, 4, TP, Cp) bf16 — 4 = positions inside each 2x2 pooling window
    # ss_ref: (2, 1, Cp)     f32 — row 0: BN scale = gamma/sqrt(var+eps)
    #                              row 1: BN shift = beta - mean*scale
    # w_ref:  (Cp, Op)       bf16 — 0.25 * conv1x1 weight (pool scale folded in)
    # o_ref:  (1, TP, Op)    f32 — lane-dense output tile
    x = x_ref[0].astype(jnp.float32)                 # (4, TP, Cp)
    scale = ss_ref[0]                                # (1, Cp)
    shift = ss_ref[1]                                # (1, Cp)

    # BatchNorm (eval) + ReLU on the VPU in f32 (correct on v5e too; ReLU is
    # nonlinear so this must precede the pooling sum).
    y = jnp.maximum(x * scale + shift, 0.0)          # (4, TP, Cp)

    # 2x2 average pool = sum over the 4 window positions (0.25 lives in w).
    pooled = y[0] + y[1] + y[2] + y[3]               # (TP, Cp)

    # 1x1 conv (commutes with avg-pool) = channel matmul on the MXU,
    # bf16 operands with f32 accumulation.
    o_ref[0] = jnp.dot(pooled.astype(jnp.bfloat16), w_ref[...],
                       preferred_element_type=jnp.float32)   # (TP, Op)


@jax.jit
def transition_forward(x_nchw, gamma, beta, running_mean, running_var, conv_w,
                       eps=1e-5):
    """x_nchw: (N, C, H, W) f32.  conv_w: (Cout, C) f32 (1x1 kernel squeezed)."""
    N, C, H, W = x_nchw.shape
    Cout = conv_w.shape[0]
    assert H % 2 == 0 and W % 2 == 0, "avg_pool2d(2) path assumes even H, W"
    Hp, Wp = H // 2, W // 2
    HWp = Hp * Wp
    Cp = _round_up(C, 128)       # lane-dense contraction dim
    Op = _round_up(Cout, 128)    # lane-dense output dim
    TP = _pick_tile_p(HWp, Cp, Op, N)
    n_tiles = pl.cdiv(HWp, TP)
    HWp_pad = n_tiles * TP       # padded pooled-pixel extent (masked off at end)

    # ---- glue: bf16 stream, channel pad BEFORE the transpose (fuses into the
    # same XLA copy), window-major layout (N, 4, Hp*Wp, Cp):
    #   element [n, 2*di+dj, i*Wp+j, c] = x[n, c, 2*i+di, 2*j+dj]
    xb = x_nchw.astype(jnp.bfloat16)
    if Cp != C:
        xb = jnp.pad(xb, ((0, 0), (0, Cp - C), (0, 0), (0, 0)))
    x_win = xb.reshape(N, Cp, Hp, 2, Wp, 2)
    x_win = jnp.transpose(x_win, (0, 3, 5, 2, 4, 1)).reshape(N, 4, HWp, Cp)
    if HWp_pad != HWp:
        x_win = jnp.pad(x_win, ((0, 0), (0, 0), (0, HWp_pad - HWp), (0, 0)))

    # Folded BN (eval): scale = gamma/sqrt(var+eps), shift = beta - mean*scale.
    scale = gamma / jnp.sqrt(running_var + eps)
    shift = beta - running_mean * scale
    ss = jnp.stack([scale, shift]).reshape(2, 1, C).astype(jnp.float32)
    if Cp != C:
        ss = jnp.pad(ss, ((0, 0), (0, 0), (0, Cp - C)))

    # 0.25 avg-pool scale folded into the f32 weight before the bf16 cast
    # (exact: power of two). Zero padding of rows/cols keeps padded lanes inert.
    w = jnp.pad(0.25 * conv_w.T, ((0, Cp - C), (0, Op - Cout))).astype(jnp.bfloat16)

    out_flat = pl.pallas_call(
        _transition_kernel,
        out_shape=jax.ShapeDtypeStruct((N, HWp_pad, Op), jnp.float32),
        grid_spec=pltpu.PrefetchScalarGridSpec(
            num_scalar_prefetch=0,
            grid=(N, n_tiles),
            in_specs=[
                pl.BlockSpec((1, 4, TP, Cp), lambda n, p: (n, 0, p, 0)),
                pl.BlockSpec((2, 1, Cp), lambda n, p: (0, 0, 0)),
                pl.BlockSpec((Cp, Op), lambda n, p: (0, 0)),
            ],
            out_specs=pl.BlockSpec((1, TP, Op), lambda n, p: (n, p, 0)),
        ),
        compiler_params=pltpu.CompilerParams(
            dimension_semantics=("parallel", "parallel"),
            vmem_limit_bytes=48 * 1024 * 1024),
    )(x_win, ss, w)

    # glue: drop spatial/channel padding, back to NCHW like the PyTorch module.
    out = out_flat[:, :HWp, :Cout].reshape(N, Hp, Wp, Cout)
    return jnp.transpose(out, (0, 3, 1, 2))


def _reference(x_nchw, gamma, beta, running_mean, running_var, conv_w, eps=1e-5):
    """Pure-JAX (f32) reference matching PyTorch eval-mode forward."""
    inv = 1.0 / jnp.sqrt(running_var + eps)
    y = (x_nchw - running_mean[None, :, None, None]) * inv[None, :, None, None]
    y = y * gamma[None, :, None, None] + beta[None, :, None, None]
    y = jnp.maximum(y, 0.0)
    z = jnp.einsum("nchw,oc->nohw", y, conv_w)
    N, O, H, W = z.shape
    return z.reshape(N, O, H // 2, 2, W // 2, 2).mean(axis=(3, 5))


if __name__ == "__main__":
    key = jax.random.PRNGKey(0)
    k1, k2, k3, k4, k5, k6 = jax.random.split(key, 6)

    # Small shapes consistent with Transition(nChannels=4, nOutChannels=8)
    N, C, H, W = 2, 4, 16, 16
    Cout = 8

    x = jax.random.normal(k1, (N, C, H, W), jnp.float32)

    # Deterministic synthetic parameters (BN eval-mode stats + 1x1 conv weight).
    gamma = 1.0 + 0.1 * jax.random.normal(k2, (C,), jnp.float32)
    beta = 0.1 * jax.random.normal(k3, (C,), jnp.float32)
    running_mean = 0.1 * jax.random.normal(k4, (C,), jnp.float32)
    running_var = 1.0 + 0.1 * jax.random.uniform(k5, (C,), jnp.float32)
    conv_w = jax.random.normal(k6, (Cout, C), jnp.float32) / jnp.sqrt(C)

    out = transition_forward(x, gamma, beta, running_mean, running_var, conv_w)
    out = jax.block_until_ready(out)

    ref = _reference(x, gamma, beta, running_mean, running_var, conv_w)
    assert out.shape == (N, Cout, H // 2, W // 2), out.shape
    # bf16 activation stream + bf16 matmul operands (f32 accumulation)
    # -> tolerance at ~bf16 rounding level.
    assert jnp.allclose(out, ref, atol=5e-2, rtol=5e-2), float(
        jnp.max(jnp.abs(out - ref)))

    print("KERNEL_OK")
</pallas_src>

<mosaic_0001>
module attributes {stable_mosaic.version = 11 : i64} {
  func.func @_transition_kernel(%arg0: i32, %arg1: i32, %arg2: memref<1x4x64x128xbf16, #tpu.memory_space<vmem>>, %arg3: memref<2x1x128xf32, #tpu.memory_space<vmem>>, %arg4: memref<128x128xbf16, #tpu.memory_space<vmem>>, %arg5: memref<1x64x128xf32, #tpu.memory_space<vmem>>) attributes {dimension_semantics = [#tpu.dimension_semantics<parallel>, #tpu.dimension_semantics<parallel>], iteration_bounds = array<i64: 2, 1>, scalar_prefetch = 0 : i64, scratch_operands = 0 : i64, tpu.core_type = #tpu.core_type<tc>, window_params = [{transform_indices = @transform_0, window_bounds = array<i64: 1, 4, 64, 128>}, {pipeline_mode = #tpu.pipeline_mode<synchronous>, transform_indices = @transform_1, window_bounds = array<i64: 2, 1, 128>}, {pipeline_mode = #tpu.pipeline_mode<synchronous>, transform_indices = @transform_2, window_bounds = array<i64: 128, 128>}, {transform_indices = @transform_3, window_bounds = array<i64: 1, 64, 128>}]} {
    %c0 = arith.constant 0 : index
    %c0_0 = arith.constant 0 : index
    %c0_1 = arith.constant 0 : index
    %c0_2 = arith.constant 0 : index
    %0 = vector.load %arg2[%c0, %c0_0, %c0_1, %c0_2] : memref<1x4x64x128xbf16, #tpu.memory_space<vmem>>, vector<1x4x64x128xbf16>
    %1 = vector.shape_cast %0 : vector<1x4x64x128xbf16> to vector<4x64x128xbf16>
    %2 = arith.extf %1 : vector<4x64x128xbf16> to vector<4x64x128xf32>
    %c0_3 = arith.constant 0 : index
    %c0_4 = arith.constant 0 : index
    %c0_5 = arith.constant 0 : index
    %3 = vector.load %arg3[%c0_3, %c0_4, %c0_5] : memref<2x1x128xf32, #tpu.memory_space<vmem>>, vector<1x1x128xf32>
    %4 = vector.shape_cast %3 : vector<1x1x128xf32> to vector<1x128xf32>
    %c1 = arith.constant 1 : index
    %c0_6 = arith.constant 0 : index
    %c0_7 = arith.constant 0 : index
    %5 = vector.load %arg3[%c1, %c0_6, %c0_7] : memref<2x1x128xf32, #tpu.memory_space<vmem>>, vector<1x1x128xf32>
    %6 = vector.shape_cast %5 : vector<1x1x128xf32> to vector<1x128xf32>
    %7 = vector.shape_cast %4 : vector<1x128xf32> to vector<1x1x128xf32>
    %8 = vector.broadcast %7 : vector<1x1x128xf32> to vector<4x64x128xf32>
    %9 = arith.mulf %2, %8 : vector<4x64x128xf32>
    %10 = vector.shape_cast %6 : vector<1x128xf32> to vector<1x1x128xf32>
    %11 = vector.broadcast %10 : vector<1x1x128xf32> to vector<4x64x128xf32>
    %12 = arith.addf %9, %11 : vector<4x64x128xf32>
    %cst = arith.constant 0.000000e+00 : f32
    %13 = vector.broadcast %cst : f32 to vector<4x64x128xf32>
    %14 = arith.maximumf %12, %13 : vector<4x64x128xf32>
    %15 = vector.extract_strided_slice %14 {offsets = [0, 0, 0], sizes = [1, 64, 128], strides = [1, 1, 1]} : vector<4x64x128xf32> to vector<1x64x128xf32>
    %16 = vector.shape_cast %15 : vector<1x64x128xf32> to vector<64x128xf32>
    %17 = vector.extract_strided_slice %14 {offsets = [1, 0, 0], sizes = [1, 64, 128], strides = [1, 1, 1]} : vector<4x64x128xf32> to vector<1x64x128xf32>
    %18 = vector.shape_cast %17 : vector<1x64x128xf32> to vector<64x128xf32>
    %19 = arith.addf %16, %18 : vector<64x128xf32>
    %20 = vector.extract_strided_slice %14 {offsets = [2, 0, 0], sizes = [1, 64, 128], strides = [1, 1, 1]} : vector<4x64x128xf32> to vector<1x64x128xf32>
    %21 = vector.shape_cast %20 : vector<1x64x128xf32> to vector<64x128xf32>
    %22 = arith.addf %19, %21 : vector<64x128xf32>
    %23 = vector.extract_strided_slice %14 {offsets = [3, 0, 0], sizes = [1, 64, 128], strides = [1, 1, 1]} : vector<4x64x128xf32> to vector<1x64x128xf32>
    %24 = vector.shape_cast %23 : vector<1x64x128xf32> to vector<64x128xf32>
    %25 = arith.addf %22, %24 : vector<64x128xf32>
    %26 = arith.truncf %25 : vector<64x128xf32> to vector<64x128xbf16>
    %c0_8 = arith.constant 0 : index
    %c0_9 = arith.constant 0 : index
    %27 = vector.load %arg4[%c0_8, %c0_9] : memref<128x128xbf16, #tpu.memory_space<vmem>>, vector<128x128xbf16>
    %cst_10 = arith.constant dense<0.000000e+00> : vector<64x128xf32>
    %28 = tpu.matmul %26, %27, %cst_10 {dimension_numbers = #tpu.dot_dimension_numbers<[1], [0], [0], [1], [0, 0, 1, 1], [], []>} : vector<64x128xbf16>, vector<128x128xbf16>, vector<64x128xf32> -> vector<64x128xf32>
    %c0_11 = arith.constant 0 : index
    %c0_12 = arith.constant 0 : index
    %c0_13 = arith.constant 0 : index
    %29 = vector.load %arg5[%c0_11, %c0_12, %c0_13] : memref<1x64x128xf32, #tpu.memory_space<vmem>>, vector<1x64x128xf32>
    %30 = vector.shape_cast %29 : vector<1x64x128xf32> to vector<64x128xf32>
    %31 = vector.shape_cast %28 : vector<64x128xf32> to vector<1x64x128xf32>
    tpu.vector_store %arg5[%c0_11, %c0_12, %c0_13], %31 {strides = array<i32>} : memref<1x64x128xf32, #tpu.memory_space<vmem>>, vector<1x64x128xf32>,
    return
  }
  func.func @transform_0(%arg0: i32, %arg1: i32) -> (i32, i32, i32, i32) {
    %c0_i32 = arith.constant 0 : i32
    %c0_i32_0 = arith.constant 0 : i32
    %c0_i32_1 = arith.constant 0 : i32
    return %arg0, %c0_i32, %arg1, %c0_i32_0 : i32, i32, i32, i32
  }
  func.func @transform_1(%arg0: i32, %arg1: i32) -> (i32, i32, i32) {
    %c0_i32 = arith.constant 0 : i32
    %c0_i32_0 = arith.constant 0 : i32
    %c0_i32_1 = arith.constant 0 : i32
    %c0_i32_2 = arith.constant 0 : i32
    return %c0_i32, %c0_i32_0, %c0_i32_1 : i32, i32, i32
  }
  func.func @transform_2(%arg0: i32, %arg1: i32) -> (i32, i32) {
    %c0_i32 = arith.constant 0 : i32
    %c0_i32_0 = arith.constant 0 : i32
    %c0_i32_1 = arith.constant 0 : i32
    return %c0_i32, %c0_i32_0 : i32, i32
  }
  func.func @transform_3(%arg0: i32, %arg1: i32) -> (i32, i32, i32) {
    %c0_i32 = arith.constant 0 : i32
    %c0_i32_0 = arith.constant 0 : i32
    return %arg0, %arg1, %c0_i32 : i32, i32, i32
  }
}

</mosaic_0001>

<llo_original>
// kernel: transition_forward.1
$region0: #{transition_forward.1}
  #allocation0 [shape = 'u32[]', space=smem, size = 0x4, offset = 0x4, fixed_abs, tag = 'smem constant byte address 0x4 - core index']
  #allocation1 [shape = 'u32[144,128]{1,0:T(1,128)}', space=vmem, size = 0x12000, scoped, tag = 'internal scratch']
  %s0 = inlined_call_operand.vmem [shape: bf16[2,4,64,128], index: 0, kind: input, shape index: {}]
  %s1 = inlined_call_operand.vmem [shape: f32[2,1,128], index: 1, kind: input, shape index: {}]
  %s2 = inlined_call_operand.vmem [shape: bf16[128,128], index: 2, kind: input, shape index: {}]
  %s3 = inlined_call_operand.vmem [shape: f32[2,64,128], index: 3, kind: output, shape index: {}]
  %s4 = sld [smem:[#allocation0]]
  $region45: #{transition_forward.1} parent=0
    _
  %s6 = ssub.s32 1, %s4
  %s7 = scalar_select 0, %s6, %s4
  loop: start=0, step=1, limit=4
  $region2: #{transition_forward.1} parent=0 // loop_pre_header
    _
  $region3: #{transition_forward.1} parent=0 // loop_header
    %s9 = sphi 0, %s13
    %p10 = scmp.ge.s32.totalorder %s9, 4
    %s16 = sphi 0, %s28
    %s17 = sphi 0, %s24
    %s18 = sphi 0, %s16
    %s19 = sphi 0, %s17
    %s20 = sphi 0, %s18
    %s21 = sphi 0, %s19
    %s33 = sphi 0, %s35
    %s36 = sphi 0, %s33
    %s37 = sphi 0, %s36
    %s53 = sphi 0, %s37
    %s57 = sphi 0, %s57
    %s59 = sphi 0, %s57
    %s60 = sphi 0, %s59
    %s74 = sphi 0, %s60
    %s78 = sphi 0, %s78
    %s80 = sphi 0, %s78
    %s81 = sphi 0, %s80
    %s95 = sphi 0, %s81
    %s103 = sphi 0, %s105
    %s106 = sphi 0, %s103
    %s107 = sphi 0, %s106
    %s123 = sphi 0, %s107
  $region4: #{transition_forward.1} parent=0 // loop_header_branch
    %12 = sbr.rel (%p10) target = $region8
  $region5: #{transition_forward.1} parent=0 // loop_body
    %s14 = ssub.s32 %s9, 1
    %s15 = ssub.s32 %s9, 2
    %s22 = sadd.s32 1, %s17
    %p23 = scmp.ge.s32.totalorder %s22, 1
    %s24 = scalar_select %p23, 0, %s22
    %s25 = sadd.s32 1, %s16
    %s26 = scalar_select %p23, %s25, %s16
    %p27 = scmp.ge.s32.totalorder %s26, 2
    %s28 = scalar_select %p27, 0, %s26
    %s29 = ssub.s32 %s16, %s28
    %s30 = ssub.s32 %s17, %s24
    %s31 = sor.u32 %s29, %s30
    %p32 = scmp.eq.s32.totalorder %s31, 0
    %s34 = sadd.s32 %s33, 1
    %s35 = scalar_select %p32, %s33, %s34
    %p38 = pneg %p32
    %p39 = scmp.eq.s32.totalorder %s9, 1
    %p40 = por %p38, %p39
    %p41 = scmp.ne.s32.totalorder %s33, %s36
    %p42 = scmp.eq.s32.totalorder %s9, 0
    %p43 = por %p41, %p42
    %p44 = scmp.ne.s32.totalorder %s33, %s36
    %p45 = scmp.eq.s32.totalorder %s14, 1
    %p46 = por %p44, %p45
    %p47 = scmp.ne.s32.totalorder %s36, %s37
    %p48 = scmp.eq.s32.totalorder %s14, 0
    %p49 = por %p47, %p48
    %p50 = scmp.ne.s32.totalorder %s36, %s37
    %p51 = scmp.eq.s32.totalorder %s15, 1
    %p52 = por %p50, %p51
    %p54 = scmp.ne.s32.totalorder %s37, %s53
    %p55 = scmp.eq.s32.totalorder %s15, 0
    %p56 = por %p54, %p55
    %s58 = sadd.s32 %s57, 1
    %p61 = scmp.eq.s32.totalorder %s9, 1
    %p62 = scmp.ne.s32.totalorder %s57, %s59
    %p63 = scmp.eq.s32.totalorder %s9, 0
    %p64 = por %p62, %p63
    %p65 = scmp.ne.s32.totalorder %s57, %s59
    %p66 = scmp.eq.s32.totalorder %s14, 1
    %p67 = por %p65, %p66
    %p68 = scmp.ne.s32.totalorder %s59, %s60
    %p69 = scmp.eq.s32.totalorder %s14, 0
    %p70 = por %p68, %p69
    %p71 = scmp.ne.s32.totalorder %s59, %s60
    %p72 = scmp.eq.s32.totalorder %s15, 1
    %p73 = por %p71, %p72
    %p75 = scmp.ne.s32.totalorder %s60, %s74
    %p76 = scmp.eq.s32.totalorder %s15, 0
    %p77 = por %p75, %p76
    %s79 = sadd.s32 %s78, 1
    %p82 = scmp.eq.s32.totalorder %s9, 1
    %p83 = scmp.ne.s32.totalorder %s78, %s80
    %p84 = scmp.eq.s32.totalorder %s9, 0
    %p85 = por %p83, %p84
    %p86 = scmp.ne.s32.totalorder %s78, %s80
    %p87 = scmp.eq.s32.totalorder %s14, 1
    %p88 = por %p86, %p87
    %p89 = scmp.ne.s32.totalorder %s80, %s81
    %p90 = scmp.eq.s32.totalorder %s14, 0
    %p91 = por %p89, %p90
    %p92 = scmp.ne.s32.totalorder %s80, %s81
    %p93 = scmp.eq.s32.totalorder %s15, 1
    %p94 = por %p92, %p93
    %p96 = scmp.ne.s32.totalorder %s81, %s95
    %p97 = scmp.eq.s32.totalorder %s15, 0
    %p98 = por %p96, %p97
    %s99 = ssub.s32 %s16, %s28
    %s100 = ssub.s32 %s17, %s24
    %s101 = sor.u32 %s99, %s100
    %p102 = scmp.eq.s32.totalorder %s101, 0
    %s104 = sadd.s32 %s103, 1
    %s105 = scalar_select %p102, %s103, %s104
    %p108 = pneg %p102
    %p109 = scmp.eq.s32.totalorder %s9, 1
    %p110 = por %p108, %p109
    %p111 = scmp.ne.s32.totalorder %s103, %s106
    %p112 = scmp.eq.s32.totalorder %s9, 0
    %p113 = por %p111, %p112
    %p114 = scmp.ne.s32.totalorder %s103, %s106
    %p115 = scmp.eq.s32.totalorder %s14, 1
    %p116 = por %p114, %p115
    %p117 = scmp.ne.s32.totalorder %s106, %s107
    %p118 = scmp.eq.s32.totalorder %s14, 0
    %p119 = por %p117, %p118
    %p120 = scmp.ne.s32.totalorder %s106, %s107
    %p121 = scmp.eq.s32.totalorder %s15, 1
    %p122 = por %p120, %p121
    %p124 = scmp.ne.s32.totalorder %s107, %s123
    %p125 = scmp.eq.s32.totalorder %s15, 0
    %p126 = por %p124, %p125
    %p127 = scmp.le.s32.totalorder 1, %s9
    %p128 = scmp.lt.s32.totalorder %s9, 3
    %p129 = pnand %p127, %p128
    %p130 = pneg %p129
    // Predicated region
    $region9: #{transition_forward.1} parent=5 // pred_check
      _
    $region10: #{transition_forward.1} parent=5 // pred_check_branch
      %132 = sbr.rel (%p129) target = $region12
    $region11: #{transition_forward.1} parent=5 // pred_region
      %s133 = ssub.s32 %s9, 1
      // Predicated region
      $region13: #{transition_forward.1} parent=11 // pred_check
        %p134 = pneg %p70
      $region14: #{transition_forward.1} parent=11 // pred_check_branch
        %136 = sbr.rel (%p134) target = $region16
      $region15: #{transition_forward.1} parent=11 // pred_region
        _
      $region16: #{transition_forward.1} parent=11 // pred_fallthru
        _
      // Predicated region
      $region17: #{transition_forward.1} parent=11 // pred_check
        %p137 = pneg %p91
      $region18: #{transition_forward.1} parent=11 // pred_check_branch
        %139 = sbr.rel (%p137) target = $region20
      $region19: #{transition_forward.1} parent=11 // pred_region
        _
      $region20: #{transition_forward.1} parent=11 // pred_fallthru
        _
    $region12: #{transition_forward.1} parent=5 // pred_fallthru
      _
    %p140 = scmp.lt.s32.totalorder %s9, 2
    // Predicated region
    $region21: #{transition_forward.1} parent=5 // pred_check
      %p141 = pneg %p140
    $region22: #{transition_forward.1} parent=5 // pred_check_branch
      %143 = sbr.rel (%p141) target = $region24
    $region23: #{transition_forward.1} parent=5 // pred_region
      // Predicated region
      $region25: #{transition_forward.1} parent=23 // pred_check
        %p144 = pneg %p43
      $region26: #{transition_forward.1} parent=23 // pred_check_branch
        %146 = sbr.rel (%p144) target = $region28
      $region27: #{transition_forward.1} parent=23 // pred_region
        %s147 = smul.u32 8, %s17
        %p148 = scmp.lt.s32.totalorder %s16, 1
        %s149 = scalar_select %p148, %s16, 1
        %p150 = scmp.lt.s32.totalorder %s147, 7
        %s151 = scalar_select %p150, %s147, 7
        %s152 = smul.addr %s149, 32
        %s153 = sadd.s32 %s151, %s152
        %s154 = smul.addr %s153, 4
        %s155 = scalar_lea.vmem %s0, %s154
        %s156 = smul.u32 8, %s17
      $region28: #{transition_forward.1} parent=23 // pred_fallthru
        _
    $region24: #{transition_forward.1} parent=5 // pred_fallthru
      _
    %p157 = scmp.le.s32.totalorder 1, %s9
    %p158 = scmp.lt.s32.totalorder %s9, 3
    %p159 = pnand %p157, %p158
    %p160 = pneg %p159
    // Predicated region
    $region29: #{transition_forward.1} parent=5 // pred_check
      _
    $region30: #{transition_forward.1} parent=5 // pred_check_branch
      %162 = sbr.rel (%p159) target = $region32
    $region31: #{transition_forward.1} parent=5 // pred_region
      %s163 = ssub.s32 %s9, 1
      %s164 = smul.u32 8, %s19
      %p165 = scmp.lt.s32.totalorder %s18, 1
      %s166 = scalar_select %p165, %s18, 1
      %p167 = scmp.lt.s32.totalorder %s164, 7
      %s168 = scalar_select %p167, %s164, 7
      %s169 = smul.addr %s166, 32
      %s170 = sadd.s32 %s168, %s169
      %s171 = smul.addr %s170, 4
      %s172 = scalar_lea.vmem %s0, %s171
      %p173 = pneg %p49
      %p174 = pneg %p46
      %p175 = pneg %p70
      %p176 = pneg %p67
      %p177 = pneg %p91
      %p178 = pneg %p88
      %p179 = pneg %p119
      %p180 = pneg %p116
      %s181 = smul.u32 8, %s19
      %p182 = scmp.lt.s32.totalorder %s18, 1
      %s183 = scalar_select %p182, %s18, 1
      %p184 = scmp.lt.s32.totalorder %s181, 7
      %s185 = scalar_select %p184, %s181, 7
      %s186 = smul.addr %s183, 8
      %s187 = sadd.s32 %s185, %s186
      %s188 = smul.addr %s187, 8
      %s189 = scalar_lea.vmem %s3, %s188
      %s190 = smul.u32 8, %s19
      %p191 = scmp.lt.s32.totalorder %s18, 1
      %s192 = scalar_select %p191, %s18, 1
      %p193 = scmp.lt.s32.totalorder %s190, 7
      %s194 = scalar_select %p193, %s190, 7
      %s195 = smul.addr %s192, 32
      %s196 = sadd.s32 %s194, %s195
      %s197 = smul.addr %s196, 4
      %s198 = scalar_lea.vmem %s0, %s197
      %s199 = smul.u32 8, %s19
      %s200 = smul.u32 8, %s19
      %p201 = scmp.lt.s32.totalorder %s18, 1
      %s202 = scalar_select %p201, %s18, 1
      %p203 = scmp.lt.s32.totalorder %s200, 7
      %s204 = scalar_select %p203, %s200, 7
      %s205 = smul.addr %s202, 8
      %s206 = sadd.s32 %s204, %s205
      %s207 = smul.addr %s206, 8
      %s208 = scalar_lea.vmem %s3, %s207
      %s209 = smul.u32 8, %s19
      %v211 = vld [vmem:[%s198] sm:$0xf]
      %v212 = vld [vmem:[%s198 + $0x4] sm:$0xf]
      %v213 = vld [vmem:[%s198 + $0x8] sm:$0xf]
      %v214 = vld [vmem:[%s198 + $0xc] sm:$0xf]
      %v215 = vld [vmem:[%s198 + $0x10] sm:$0xf]
      %v216 = vld [vmem:[%s198 + $0x14] sm:$0xf]
      %v217 = vld [vmem:[%s198 + $0x18] sm:$0xf]
      %v218 = vld [vmem:[%s198 + $0x1c] sm:$0xf]
      %v219 = vld [vmem:[%s198 + $0x20] sm:$0xf]
      %v220 = vld [vmem:[%s198 + $0x24] sm:$0xf]
      %v221 = vld [vmem:[%s198 + $0x28] sm:$0xf]
      %v222 = vld [vmem:[%s198 + $0x2c] sm:$0xf]
      %v223 = vld [vmem:[%s198 + $0x30] sm:$0xf]
      %v224 = vld [vmem:[%s198 + $0x34] sm:$0xf]
      %v225 = vld [vmem:[%s198 + $0x38] sm:$0xf]
      %v226 = vld [vmem:[%s198 + $0x3c] sm:$0xf]
      %v227 = vld [vmem:[%s198 + $0x40] sm:$0xf]
      %v228 = vld [vmem:[%s198 + $0x44] sm:$0xf]
      %v229 = vld [vmem:[%s198 + $0x48] sm:$0xf]
      %v230 = vld [vmem:[%s198 + $0x4c] sm:$0xf]
      %v231 = vld [vmem:[%s198 + $0x50] sm:$0xf]
      %v232 = vld [vmem:[%s198 + $0x54] sm:$0xf]
      %v233 = vld [vmem:[%s198 + $0x58] sm:$0xf]
      %v234 = vld [vmem:[%s198 + $0x5c] sm:$0xf]
      %v235 = vld [vmem:[%s198 + $0x60] sm:$0xf]
      %v236 = vld [vmem:[%s198 + $0x64] sm:$0xf]
      %v237 = vld [vmem:[%s198 + $0x68] sm:$0xf]
      %v238 = vld [vmem:[%s198 + $0x6c] sm:$0xf]
      %v239 = vld [vmem:[%s198 + $0x70] sm:$0xf]
      %v240 = vld [vmem:[%s198 + $0x74] sm:$0xf]
      %v241 = vld [vmem:[%s198 + $0x78] sm:$0xf]
      %v242 = vld [vmem:[%s198 + $0x7c] sm:$0xf]
      %v243 = vunpack.c.l.bf16 %v211
      %v244 = vunpack.c.l.bf16 %v212
      %v245 = vunpack.c.l.bf16 %v213
      %v246 = vunpack.c.l.bf16 %v214
      %v247 = vunpack.c.l.bf16 %v215
      %v248 = vunpack.c.l.bf16 %v216
      %v249 = vunpack.c.l.bf16 %v217
      %v250 = vunpack.c.l.bf16 %v218
      %v251 = vunpack.c.l.bf16 %v219
      %v252 = vunpack.c.l.bf16 %v220
      %v253 = vunpack.c.l.bf16 %v221
      %v254 = vunpack.c.l.bf16 %v222
      %v255 = vunpack.c.l.bf16 %v223
      %v256 = vunpack.c.l.bf16 %v224
      %v257 = vunpack.c.l.bf16 %v225
      %v258 = vunpack.c.l.bf16 %v226
      %v259 = vunpack.c.l.bf16 %v227
      %v260 = vunpack.c.l.bf16 %v228
      %v261 = vunpack.c.l.bf16 %v229
      %v262 = vunpack.c.l.bf16 %v230
      %v263 = vunpack.c.l.bf16 %v231
      %v264 = vunpack.c.l.bf16 %v232
      %v265 = vunpack.c.l.bf16 %v233
      %v266 = vunpack.c.l.bf16 %v234
      %v267 = vunpack.c.l.bf16 %v235
      %v268 = vunpack.c.l.bf16 %v236
      %v269 = vunpack.c.l.bf16 %v237
      %v270 = vunpack.c.l.bf16 %v238
      %v271 = vunpack.c.l.bf16 %v239
      %v272 = vunpack.c.l.bf16 %v240
      %v273 = vunpack.c.l.bf16 %v241
      %v274 = vunpack.c.l.bf16 %v242
      %v275 = vld [vmem:[%s1] sm:$0x1]
      %s276 = scalar_lea.vmem %s1, 1
      %v277 = vld [vmem:[%s276] sm:$0x1]
      %v279 = vlaneseq
      %v280 = vshrl.u32 %v279, 7
      %v281 = vsub.s32 0, %v280
      %v282 = vrot.slane %v275, %v281
      %v284 = vmul.f32 %v243, %v282
      %v285 = vmul.f32 %v244, %v282
      %v286 = vmul.f32 %v245, %v282
      %v287 = vmul.f32 %v246, %v282
      %v288 = vmul.f32 %v247, %v282
      %v289 = vmul.f32 %v248, %v282
      %v290 = vmul.f32 %v249, %v282
      %v291 = vmul.f32 %v250, %v282
      %v292 = vmul.f32 %v251, %v282
      %v293 = vmul.f32 %v252, %v282
      %v294 = vmul.f32 %v253, %v282
      %v295 = vmul.f32 %v254, %v282
      %v296 = vmul.f32 %v255, %v282
      %v297 = vmul.f32 %v256, %v282
      %v298 = vmul.f32 %v257, %v282
      %v299 = vmul.f32 %v258, %v282
      %v300 = vmul.f32 %v259, %v282
      %v301 = vmul.f32 %v260, %v282
      %v302 = vmul.f32 %v261, %v282
      %v303 = vmul.f32 %v262, %v282
      %v304 = vmul.f32 %v263, %v282
      %v305 = vmul.f32 %v264, %v282
      %v306 = vmul.f32 %v265, %v282
      %v307 = vmul.f32 %v266, %v282
      %v308 = vmul.f32 %v267, %v282
      %v309 = vmul.f32 %v268, %v282
      %v310 = vmul.f32 %v269, %v282
      %v311 = vmul.f32 %v270, %v282
      %v312 = vmul.f32 %v271, %v282
      %v313 = vmul.f32 %v272, %v282
      %v314 = vmul.f32 %v273, %v282
      %v315 = vmul.f32 %v274, %v282
      %v317 = vlaneseq
      %v318 = vshrl.u32 %v317, 7
      %v319 = vsub.s32 0, %v318
      %v320 = vrot.slane %v277, %v319
      %v322 = vadd.f32 %v284, %v320
      %v323 = vadd.f32 %v285, %v320
      %v324 = vadd.f32 %v286, %v320
      %v325 = vadd.f32 %v287, %v320
      %v326 = vadd.f32 %v288, %v320
      %v327 = vadd.f32 %v289, %v320
      %v328 = vadd.f32 %v290, %v320
      %v329 = vadd.f32 %v291, %v320
      %v330 = vadd.f32 %v292, %v320
      %v331 = vadd.f32 %v293, %v320
      %v332 = vadd.f32 %v294, %v320
      %v333 = vadd.f32 %v295, %v320
      %v334 = vadd.f32 %v296, %v320
      %v335 = vadd.f32 %v297, %v320
      %v336 = vadd.f32 %v298, %v320
      %v337 = vadd.f32 %v299, %v320
      %v338 = vadd.f32 %v300, %v320
      %v339 = vadd.f32 %v301, %v320
      %v340 = vadd.f32 %v302, %v320
      %v341 = vadd.f32 %v303, %v320
      %v342 = vadd.f32 %v304, %v320
      %v343 = vadd.f32 %v305, %v320
      %v344 = vadd.f32 %v306, %v320
      %v345 = vadd.f32 %v307, %v320
      %v346 = vadd.f32 %v308, %v320
      %v347 = vadd.f32 %v309, %v320
      %v348 = vadd.f32 %v310, %v320
      %v349 = vadd.f32 %v311, %v320
      %v350 = vadd.f32 %v312, %v320
      %v351 = vadd.f32 %v313, %v320
      %v352 = vadd.f32 %v314, %v320
      %v353 = vadd.f32 %v315, %v320
      %v354 = vmax.f32 %v322, 0.0
      %v355 = vmax.f32 %v323, 0.0
      %v356 = vmax.f32 %v324, 0.0
      %v357 = vmax.f32 %v325, 0.0
      %v358 = vmax.f32 %v326, 0.0
      %v359 = vmax.f32 %v327, 0.0
      %v360 = vmax.f32 %v328, 0.0
      %v361 = vmax.f32 %v329, 0.0
      %v362 = vmax.f32 %v330, 0.0
      %v363 = vmax.f32 %v331, 0.0
      %v364 = vmax.f32 %v332, 0.0
      %v365 = vmax.f32 %v333, 0.0
      %v366 = vmax.f32 %v334, 0.0
      %v367 = vmax.f32 %v335, 0.0
      %v368 = vmax.f32 %v336, 0.0
      %v369 = vmax.f32 %v337, 0.0
      %v370 = vmax.f32 %v338, 0.0
      %v371 = vmax.f32 %v339, 0.0
      %v372 = vmax.f32 %v340, 0.0
      %v373 = vmax.f32 %v341, 0.0
      %v374 = vmax.f32 %v342, 0.0
      %v375 = vmax.f32 %v343, 0.0
      %v376 = vmax.f32 %v344, 0.0
      %v377 = vmax.f32 %v345, 0.0
      %v378 = vmax.f32 %v346, 0.0
      %v379 = vmax.f32 %v347, 0.0
      %v380 = vmax.f32 %v348, 0.0
      %v381 = vmax.f32 %v349, 0.0
      %v382 = vmax.f32 %v350, 0.0
      %v383 = vmax.f32 %v351, 0.0
      %v384 = vmax.f32 %v352, 0.0
      %v385 = vmax.f32 %v353, 0.0
      %v386 = vadd.f32 %v354, %v362
      %v387 = vadd.f32 %v355, %v363
      %v388 = vadd.f32 %v356, %v364
      %v389 = vadd.f32 %v357, %v365
      %v390 = vadd.f32 %v358, %v366
      %v391 = vadd.f32 %v359, %v367
      %v392 = vadd.f32 %v360, %v368
      %v393 = vadd.f32 %v361, %v369
      %v394 = vadd.f32 %v386, %v370
      %v395 = vadd.f32 %v387, %v371
      %v396 = vadd.f32 %v388, %v372
      %v397 = vadd.f32 %v389, %v373
      %v398 = vadd.f32 %v390, %v374
      %v399 = vadd.f32 %v391, %v375
      %v400 = vadd.f32 %v392, %v376
      %v401 = vadd.f32 %v393, %v377
      %v402 = vadd.f32 %v394, %v378
      %v403 = vadd.f32 %v395, %v379
      %v404 = vadd.f32 %v396, %v380
      %v405 = vadd.f32 %v397, %v381
      %v406 = vadd.f32 %v398, %v382
      %v407 = vadd.f32 %v399, %v383
      %v408 = vadd.f32 %v400, %v384
      %v409 = vadd.f32 %v401, %v385
      %v410 = vpack.c.bf16 %v403, %v402
      %v411 = vpack.c.bf16 %v405, %v404
      %v412 = vpack.c.bf16 %v407, %v406
      %v413 = vpack.c.bf16 %v409, %v408
      %v414 = vld [vmem:[%s2] sm:$0xf]
      %v415 = vld [vmem:[%s2 + $0x4] sm:$0xf]
      %v416 = vld [vmem:[%s2 + $0x8] sm:$0xf]
      %v417 = vld [vmem:[%s2 + $0xc] sm:$0xf]
      %v418 = vld [vmem:[%s2 + $0x10] sm:$0xf]
      %v419 = vld [vmem:[%s2 + $0x14] sm:$0xf]
      %v420 = vld [vmem:[%s2 + $0x18] sm:$0xf]
      %v421 = vld [vmem:[%s2 + $0x1c] sm:$0xf]
      %v422 = vld [vmem:[%s2 + $0x20] sm:$0xf]
      %v423 = vld [vmem:[%s2 + $0x24] sm:$0xf]
      %v424 = vld [vmem:[%s2 + $0x28] sm:$0xf]
      %v425 = vld [vmem:[%s2 + $0x2c] sm:$0xf]
      %v426 = vld [vmem:[%s2 + $0x30] sm:$0xf]
      %v427 = vld [vmem:[%s2 + $0x34] sm:$0xf]
      %v428 = vld [vmem:[%s2 + $0x38] sm:$0xf]
      %v429 = vld [vmem:[%s2 + $0x3c] sm:$0xf]
      %v446 = vunpack.c.l.b16 %v414
      %v447 = vunpack.c.l.b16 %v415
      %v448 = vunpack.c.l.b16 %v416
      %v449 = vunpack.c.l.b16 %v417
      %v450 = vunpack.c.l.b16 %v418
      %v451 = vunpack.c.l.b16 %v419
      %v452 = vunpack.c.l.b16 %v420
      %v453 = vunpack.c.l.b16 %v421
      %v454 = vunpack.c.l.b16 %v422
      %v455 = vunpack.c.l.b16 %v423
      %v456 = vunpack.c.l.b16 %v424
      %v457 = vunpack.c.l.b16 %v425
      %v458 = vunpack.c.l.b16 %v426
      %v459 = vunpack.c.l.b16 %v427
      %v460 = vunpack.c.l.b16 %v428
      %v461 = vunpack.c.l.b16 %v429
      %v462 = vpack.c.b16 %v447, %v446
      %v463 = vpack.c.b16 %v449, %v448
      %v464 = vpack.c.b16 %v451, %v450
      %v465 = vpack.c.b16 %v453, %v452
      %v466 = vpack.c.b16 %v455, %v454
      %v467 = vpack.c.b16 %v457, %v456
      %v468 = vpack.c.b16 %v459, %v458
      %v469 = vpack.c.b16 %v461, %v460
      %478 = vmatprep.subr.bf16.mxu0 0
      %479 = vmatpush1.bf16.msra.mxu0 %v462
      %480 = vmatprep.subr.bf16.mxu0 0
      %481 = vmatpush1.bf16.msra.mxu0 %v463
      %482 = vmatprep.subr.bf16.mxu0 0
      %483 = vmatpush1.bf16.msra.mxu0 %v464
      %484 = vmatprep.subr.bf16.mxu0 0
      %485 = vmatpush1.bf16.msra.mxu0 %v465
      %486 = vmatprep.subr.bf16.mxu0 0
      %487 = vmatpush1.bf16.msra.mxu0 %v466
      %488 = vmatprep.subr.bf16.mxu0 0
      %489 = vmatpush1.bf16.msra.mxu0 %v467
      %490 = vmatprep.subr.bf16.mxu0 0
      %491 = vmatpush1.bf16.msra.mxu0 %v468
      %492 = vmatprep.subr.bf16.mxu0 0
      %493 = vmatpush1.bf16.msra.mxu0 %v469
      %494 = vmatprep.subr.bf16.mxu0 0
      %495 = vmatpush1.bf16.msra.mxu0 0
      %496 = vmatprep.subr.bf16.mxu0 0
      %497 = vmatpush1.bf16.msra.mxu0 0
      %498 = vmatprep.subr.bf16.mxu0 0
      %499 = vmatpush1.bf16.msra.mxu0 0
      %500 = vmatprep.subr.bf16.mxu0 0
      %501 = vmatpush1.bf16.msra.mxu0 0
      %502 = vmatprep.subr.bf16.mxu0 0
      %503 = vmatpush1.bf16.msra.mxu0 0
      %504 = vmatprep.subr.bf16.mxu0 0
      %505 = vmatpush1.bf16.msra.mxu0 0
      %506 = vmatprep.subr.bf16.mxu0 0
      %507 = vmatpush1.bf16.msra.mxu0 0
      %508 = vmatprep.subr.bf16.mxu0 0
      %509 = vmatpush1.bf16.msra.mxu0 0
      %510 = vmatprep.mubr.bf16.mxu0 0
      %511 = vmatmul.mubr.bf16.gmra.mrb[0].mxu0 %v410
      %v512 = vpop.f32.mrb[0].mxu0
      %v513 = vadd.f32 0.0, %v512
      %v514 = vpop.f32.mrb[0].mxu0
      %v515 = vpop.f32.mrb[0].mxu0
      %v516 = vadd.f32 0.0, %v515
      %v517 = vpop.f32.mrb[0].mxu0
      %518 = vmatprep.mubr.bf16.mxu0 0
      %519 = vmatmul.mubr.bf16.gmra.mrb[0].mxu0 %v411
      %v520 = vpop.f32.mrb[0].mxu0
      %v521 = vadd.f32 0.0, %v520
      %v522 = vpop.f32.mrb[0].mxu0
      %v523 = vpop.f32.mrb[0].mxu0
      %v524 = vadd.f32 0.0, %v523
      %v525 = vpop.f32.mrb[0].mxu0
      %526 = vmatprep.mubr.bf16.mxu0 0
      %527 = vmatmul.mubr.bf16.gmra.mrb[0].mxu0 %v412
      %v528 = vpop.f32.mrb[0].mxu0
      %v529 = vadd.f32 0.0, %v528
      %v530 = vpop.f32.mrb[0].mxu0
      %v531 = vpop.f32.mrb[0].mxu0
      %v532 = vadd.f32 0.0, %v531
      %v533 = vpop.f32.mrb[0].mxu0
      %534 = vmatprep.mubr.bf16.mxu0 0
      %535 = vmatmul.mubr.bf16.gmra.mrb[0].mxu0 %v413
      %v536 = vpop.f32.mrb[0].mxu0
      %v537 = vadd.f32 0.0, %v536
      %v538 = vpop.f32.mrb[0].mxu0
      %v539 = vpop.f32.mrb[0].mxu0
      %v540 = vadd.f32 0.0, %v539
      %v541 = vpop.f32.mrb[0].mxu0
      %542 = vdwg.mxu0
      %543 = vst [vmem:[%s208] sm:$0xff] %v513
      %544 = vst [vmem:[%s208 + $0x8] sm:$0xff] %v516
      %545 = vst [vmem:[%s208 + $0x10] sm:$0xff] %v521
      %546 = vst [vmem:[%s208 + $0x18] sm:$0xff] %v524
      %547 = vst [vmem:[%s208 + $0x20] sm:$0xff] %v529
      %548 = vst [vmem:[%s208 + $0x28] sm:$0xff] %v532
      %549 = vst [vmem:[%s208 + $0x30] sm:$0xff] %v537
      %550 = vst [vmem:[%s208 + $0x38] sm:$0xff] %v540
      %s551 = smul.u32 8, %s19
      %p552 = scmp.lt.s32.totalorder %s18, 1
      %s553 = scalar_select %p552, %s18, 1
      %p554 = scmp.lt.s32.totalorder %s551, 7
      %s555 = scalar_select %p554, %s551, 7
      %s556 = smul.addr %s553, 8
      %s557 = sadd.s32 %s555, %s556
      %s558 = smul.addr %s557, 8
      %s559 = scalar_lea.vmem %s3, %s558
      // Predicated region
      $region33: #{transition_forward.1} parent=31 // pred_check
        %p560 = pneg %p116
      $region34: #{transition_forward.1} parent=31 // pred_check_branch
        %562 = sbr.rel (%p560) target = $region36
      $region35: #{transition_forward.1} parent=31 // pred_region
        %s563 = smul.u32 8, %s19
      $region36: #{transition_forward.1} parent=31 // pred_fallthru
        _
    $region32: #{transition_forward.1} parent=5 // pred_fallthru
      _
    %p564 = scmp.le.s32.totalorder 2, %s9
    // Predicated region
    $region37: #{transition_forward.1} parent=5 // pred_check
      %p565 = pneg %p564
    $region38: #{transition_forward.1} parent=5 // pred_check_branch
      %567 = sbr.rel (%p565) target = $region40
    $region39: #{transition_forward.1} parent=5 // pred_region
      %s568 = ssub.s32 %s9, 2
      // Predicated region
      $region41: #{transition_forward.1} parent=39 // pred_check
        %p569 = pneg %p122
      $region42: #{transition_forward.1} parent=39 // pred_check_branch
        %571 = sbr.rel (%p569) target = $region44
      $region43: #{transition_forward.1} parent=39 // pred_region
        %s572 = smul.u32 8, %s21
        %p573 = scmp.lt.s32.totalorder %s20, 1
        %s574 = scalar_select %p573, %s20, 1
        %p575 = scmp.lt.s32.totalorder %s572, 7
        %s576 = scalar_select %p575, %s572, 7
        %s577 = smul.addr %s574, 8
        %s578 = sadd.s32 %s576, %s577
        %s579 = smul.addr %s578, 8
        %s580 = scalar_lea.vmem %s3, %s579
      $region44: #{transition_forward.1} parent=39 // pred_fallthru
        _
    $region40: #{transition_forward.1} parent=5 // pred_fallthru
      _
  $region6: #{transition_forward.1} parent=0 // loop_footer
    %s13 = sadd.s32 1, %s9
  $region7: #{transition_forward.1} parent=0 // loop_footer_branch
    %8 = sbr.rel target = $region3
  $region8: #{transition_forward.1} parent=0 // loop_exit
    _

</llo_original>
